<compile_context>
chip_gen: v7x
topology: tpu7x:2x2x1
jax: 0.10.0
libtpu: 0.0.40
codegen_flags: <defaults>
</compile_context>

<pallas_src>
import functools

import numpy as np

import jax
import jax.numpy as jnp
from jax.experimental import pallas as pl
from jax.experimental.pallas import tpu as pltpu


# --------------------------------------------------------------------------
# Kernel
# --------------------------------------------------------------------------
def _energy_shifter_kernel(species_ref, energies_ref, out_ref, *,
                           self_energies, num_species, fit_intercept):
    """species_ref: (A, TILE_C) int8, conformations on the lane axis.
    energies_ref / out_ref: (1, TILE_C) float32, lane-dense (aliased)."""
    # One unpack of the int8 tile to int32 (proven lowering path); all
    # per-species work below stays on small rows.
    sp = species_ref[...].astype(jnp.int32)                     # (A, TC)

    # Start from the energies row; fold the intercept into it (no separate
    # broadcast add at the end).
    acc = energies_ref[...]                                     # (1, TC) f32
    if fit_intercept:
        acc = acc + jnp.float32(self_energies[-1])

    # Exact per-species atom counts (small ints, exact in f32), reduced over
    # the atom (sublane) axis; only the reduced (1, TC) row is scaled.
    for s in range(num_species):
        cnt = jnp.sum(sp == s, axis=0, keepdims=True,
                      dtype=jnp.float32)                        # (1, TC)
        acc = acc + cnt * jnp.float32(self_energies[s])

    out_ref[...] = acc


# --------------------------------------------------------------------------
# Tiling
# --------------------------------------------------------------------------
def _round_up(x, m):
    return -(-x // m) * m


def _choose_tiling(n_conf, n_atoms, max_tile_c):
    """Fewest, biggest lane tiles. Per-grid-step overhead (~0.35 us) dwarfs
    the per-tile work, so tiles are as large as the (generous) VMEM budget
    allows; no forced >=2-step shrink."""
    # Keep one species tile <= ~8 MiB (double-buffered 16 MiB) -- far below
    # the 32 MiB default scoped VMEM on v5e/v6e/v7x.
    byte_budget = 8 * 1024 * 1024
    max_tile_c = max(128, min(max_tile_c,
                              (byte_budget // max(n_atoms, 1)) // 128 * 128))
    c128 = _round_up(n_conf, 128)
    grid_c = -(-c128 // max_tile_c)                 # fewest steps
    tile_c = _round_up(-(-c128 // grid_c), 128)     # balance the last tile
    return grid_c, tile_c, grid_c * tile_c


# --------------------------------------------------------------------------
# Forward (jitted so the relayout fuses into one pass next to the kernel)
# --------------------------------------------------------------------------
def _forward_impl(species, energies, self_energies, fit_intercept,
                  species_transposed, max_tile_c):
    if species_transposed:
        A, C = species.shape
    else:
        C, A = species.shape
    num_species = len(self_energies) - (1 if fit_intercept else 0)

    grid_c, tile_c, c_pad = _choose_tiling(C, A, max_tile_c)

    if species_transposed:
        # Species already (A, C) -- ideally int8; zero preprocessing when the
        # dtype is int8 and C is already a multiple of the tile.
        sp_t = species
        if sp_t.dtype != jnp.int8:
            sp_t = sp_t.astype(jnp.int8)
        if c_pad != C:
            sp_t = jnp.pad(sp_t, ((0, 0), (0, c_pad - C)), constant_values=-1)
    else:
        # Natural torchani layout (C, A): cast + pad + transpose fuse into a
        # single XLA pass under this jit.
        sp_t = jnp.pad(species.astype(jnp.int8), ((0, c_pad - C), (0, 0)),
                       constant_values=-1).T                    # (A, c_pad)

    e_row = energies.astype(jnp.float32)
    if c_pad != C:
        e_row = jnp.pad(e_row, (0, c_pad - C))
    e_row = e_row.reshape(1, c_pad)                             # (1, c_pad)

    kernel = functools.partial(_energy_shifter_kernel,
                               self_energies=self_energies,
                               num_species=num_species,
                               fit_intercept=fit_intercept)

    shifted = pl.pallas_call(
        kernel,
        out_shape=jax.ShapeDtypeStruct((1, c_pad), jnp.float32),
        grid=(grid_c,),
        in_specs=[
            pl.BlockSpec((A, tile_c), lambda i: (0, i)),   # species tile
            pl.BlockSpec((1, tile_c), lambda i: (0, i)),   # energies tile
        ],
        out_specs=pl.BlockSpec((1, tile_c), lambda i: (0, i)),
        input_output_aliases={1: 0},                      # energies -> output
        compiler_params=pltpu.CompilerParams(
            dimension_semantics=("parallel",)),            # v7x: 2 TCs split it
    )(sp_t, e_row)

    return shifted[0, :C]


_forward_jit = jax.jit(_forward_impl, static_argnums=(2, 3, 4, 5))


def energy_shifter_forward(species, energies, self_energies,
                           fit_intercept=False, species_transposed=False,
                           max_tile_c=8192):
    """JAX/Pallas equivalent of torchani EnergyShifter.forward.

    Args:
      species: (C, A) integer array (-1 = padding atom), or (A, C) int8 when
        ``species_transposed=True`` (producer-side layout, zero relayout).
      energies: (C,) molecular energies.
      self_energies: static host sequence of per-atom-type self energies
        (plus intercept as last entry when fit_intercept). Baked in as
        constants; must not be a traced value.
    Returns:
      (species, energies + sae) with the shifted energies as (C,) float32.
    """
    se = tuple(float(x) for x in
               np.asarray(self_energies, dtype=np.float64).reshape(-1))
    shifted = _forward_jit(species, energies, se, bool(fit_intercept),
                           bool(species_transposed), int(max_tile_c))
    return species, shifted


# --------------------------------------------------------------------------
# Self-test
# --------------------------------------------------------------------------
if __name__ == "__main__":
    key = jax.random.PRNGKey(0)
    k_sp, k_en, k_sp2, k_en2 = jax.random.split(key, 4)

    C, A, S = 300, 16, 4    # conformations, atoms per molecule, atom types
    species = jax.random.randint(k_sp, (C, A), minval=-1, maxval=S,
                                 dtype=jnp.int32)
    energies = jax.random.normal(k_en, (C,), dtype=jnp.float32)
    self_energies = (-0.5, -37.8, -54.5, -75.0)
    se_arr = jnp.asarray(self_energies, dtype=jnp.float32)

    def reference(sp, en):
        sae = jnp.where(sp >= 0, se_arr[jnp.clip(sp, 0, S - 1)], 0.0).sum(axis=1)
        return en + sae

    # --- natural (C, A) layout, no intercept ---
    sp_out, e_out = energy_shifter_forward(species, energies, self_energies,
                                           fit_intercept=False)
    jax.block_until_ready(e_out)
    ref = reference(species, energies)
    assert e_out.shape == (C,)
    assert jnp.allclose(e_out, ref, rtol=1e-5, atol=1e-3), \
        "mismatch vs reference (no intercept)"
    assert jnp.array_equal(sp_out, species)

    # --- with intercept (last self-energy entry) ---
    se_i = self_energies + (1.25,)
    _, e_out_i = energy_shifter_forward(species, energies, se_i,
                                        fit_intercept=True)
    jax.block_until_ready(e_out_i)
    assert jnp.allclose(e_out_i, ref + 1.25, rtol=1e-5, atol=1e-3), \
        "mismatch vs reference (intercept)"

    # --- producer-side (A, C) int8 layout: zero-preprocessing fast path ---
    C2 = 512
    species2 = jax.random.randint(k_sp2, (C2, A), minval=-1, maxval=S,
                                  dtype=jnp.int32)
    energies2 = jax.random.normal(k_en2, (C2,), dtype=jnp.float32)
    species2_t = species2.astype(jnp.int8).T        # done once by the producer
    _, e2 = energy_shifter_forward(species2_t, energies2, self_energies,
                                   fit_intercept=False, species_transposed=True)
    jax.block_until_ready(e2)
    ref2 = reference(species2, energies2)
    assert jnp.allclose(e2, ref2, rtol=1e-5, atol=1e-3), \
        "mismatch vs reference (transposed fast path)"

    print("KERNEL_OK")
</pallas_src>

<mosaic_0001>
module attributes {stable_mosaic.version = 11 : i64} {
  func.func @_energy_shifter_kernel(%arg0: i32, %arg1: memref<16x384xi8, #tpu.memory_space<vmem>>, %arg2: memref<1x384xf32, #tpu.memory_space<vmem>>, %arg3: memref<1x384xf32, #tpu.memory_space<vmem>>) attributes {dimension_semantics = [#tpu.dimension_semantics<parallel>], iteration_bounds = array<i64: 1>, scalar_prefetch = 0 : i64, scratch_operands = 0 : i64, tpu.core_type = #tpu.core_type<tc>, window_params = [{transform_indices = @transform_0, window_bounds = array<i64: 16, 384>}, {transform_indices = @transform_1, window_bounds = array<i64: 1, 384>}, {transform_indices = @transform_2, window_bounds = array<i64: 1, 384>}]} {
    %c0 = arith.constant 0 : index
    %c0_0 = arith.constant 0 : index
    %0 = vector.load %arg1[%c0, %c0_0] : memref<16x384xi8, #tpu.memory_space<vmem>>, vector<16x384xi8>
    %1 = arith.extsi %0 : vector<16x384xi8> to vector<16x384xi32>
    %c0_1 = arith.constant 0 : index
    %c0_2 = arith.constant 0 : index
    %2 = vector.load %arg2[%c0_1, %c0_2] : memref<1x384xf32, #tpu.memory_space<vmem>>, vector<1x384xf32>
    %c0_i32 = arith.constant 0 : i32
    %3 = vector.broadcast %c0_i32 : i32 to vector<16x384xi32>
    %4 = arith.cmpi eq, %1, %3 : vector<16x384xi32>
    %5 = arith.extui %4 : vector<16x384xi1> to vector<16x384xi32>
    %6 = arith.sitofp %5 : vector<16x384xi32> to vector<16x384xf32>
    %cst = arith.constant dense<0.000000e+00> : vector<384xf32>
    %7 = vector.multi_reduction <add>, %6, %cst [0] : vector<16x384xf32> to vector<384xf32>
    %8 = vector.shape_cast %7 : vector<384xf32> to vector<1x384xf32>
    %cst_3 = arith.constant -5.000000e-01 : f32
    %9 = vector.broadcast %cst_3 : f32 to vector<1x384xf32>
    %10 = arith.mulf %8, %9 : vector<1x384xf32>
    %11 = arith.addf %2, %10 : vector<1x384xf32>
    %c1_i32 = arith.constant 1 : i32
    %12 = vector.broadcast %c1_i32 : i32 to vector<16x384xi32>
    %13 = arith.cmpi eq, %1, %12 : vector<16x384xi32>
    %14 = arith.extui %13 : vector<16x384xi1> to vector<16x384xi32>
    %15 = arith.sitofp %14 : vector<16x384xi32> to vector<16x384xf32>
    %cst_4 = arith.constant dense<0.000000e+00> : vector<384xf32>
    %16 = vector.multi_reduction <add>, %15, %cst_4 [0] : vector<16x384xf32> to vector<384xf32>
    %17 = vector.shape_cast %16 : vector<384xf32> to vector<1x384xf32>
    %cst_5 = arith.constant -3.780000e+01 : f32
    %18 = vector.broadcast %cst_5 : f32 to vector<1x384xf32>
    %19 = arith.mulf %17, %18 : vector<1x384xf32>
    %20 = arith.addf %11, %19 : vector<1x384xf32>
    %c2_i32 = arith.constant 2 : i32
    %21 = vector.broadcast %c2_i32 : i32 to vector<16x384xi32>
    %22 = arith.cmpi eq, %1, %21 : vector<16x384xi32>
    %23 = arith.extui %22 : vector<16x384xi1> to vector<16x384xi32>
    %24 = arith.sitofp %23 : vector<16x384xi32> to vector<16x384xf32>
    %cst_6 = arith.constant dense<0.000000e+00> : vector<384xf32>
    %25 = vector.multi_reduction <add>, %24, %cst_6 [0] : vector<16x384xf32> to vector<384xf32>
    %26 = vector.shape_cast %25 : vector<384xf32> to vector<1x384xf32>
    %cst_7 = arith.constant -5.450000e+01 : f32
    %27 = vector.broadcast %cst_7 : f32 to vector<1x384xf32>
    %28 = arith.mulf %26, %27 : vector<1x384xf32>
    %29 = arith.addf %20, %28 : vector<1x384xf32>
    %c3_i32 = arith.constant 3 : i32
    %30 = vector.broadcast %c3_i32 : i32 to vector<16x384xi32>
    %31 = arith.cmpi eq, %1, %30 : vector<16x384xi32>
    %32 = arith.extui %31 : vector<16x384xi1> to vector<16x384xi32>
    %33 = arith.sitofp %32 : vector<16x384xi32> to vector<16x384xf32>
    %cst_8 = arith.constant dense<0.000000e+00> : vector<384xf32>
    %34 = vector.multi_reduction <add>, %33, %cst_8 [0] : vector<16x384xf32> to vector<384xf32>
    %35 = vector.shape_cast %34 : vector<384xf32> to vector<1x384xf32>
    %cst_9 = arith.constant -7.500000e+01 : f32
    %36 = vector.broadcast %cst_9 : f32 to vector<1x384xf32>
    %37 = arith.mulf %35, %36 : vector<1x384xf32>
    %38 = arith.addf %29, %37 : vector<1x384xf32>
    %c0_10 = arith.constant 0 : index
    %c0_11 = arith.constant 0 : index
    %39 = vector.load %arg3[%c0_10, %c0_11] : memref<1x384xf32, #tpu.memory_space<vmem>>, vector<1x384xf32>
    tpu.vector_store %arg3[%c0_10, %c0_11], %38 {strides = array<i32>} : memref<1x384xf32, #tpu.memory_space<vmem>>, vector<1x384xf32>,
    return
  }
  func.func @transform_0(%arg0: i32) -> (i32, i32) {
    %c0_i32 = arith.constant 0 : i32
    %c0_i32_0 = arith.constant 0 : i32
    return %c0_i32, %arg0 : i32, i32
  }
  func.func @transform_1(%arg0: i32) -> (i32, i32) {
    %c0_i32 = arith.constant 0 : i32
    %c0_i32_0 = arith.constant 0 : i32
    return %c0_i32, %arg0 : i32, i32
  }
  func.func @transform_2(%arg0: i32) -> (i32, i32) {
    %c0_i32 = arith.constant 0 : i32
    %c0_i32_0 = arith.constant 0 : i32
    return %c0_i32, %arg0 : i32, i32
  }
}

</mosaic_0001>

<llo_original>
// kernel: _forward_impl.1
$region0: #{_forward_impl.1}
  #allocation0 [shape = 'u32[]', space=smem, size = 0x4, offset = 0x4, fixed_abs, tag = 'smem constant byte address 0x4 - core index']
  #allocation1 [shape = 'u32[144,128]{1,0:T(1,128)}', space=vmem, size = 0x12000, scoped, tag = 'internal scratch']
  %s0 = inlined_call_operand.vmem [shape: s8[16,384], index: 0, kind: input, shape index: {}]
  %s1 = inlined_call_operand.vmem [shape: f32[1,384], index: 1, kind: input, shape index: {}, may-alias: {1,2}]
  %s2 = inlined_call_operand.vmem [shape: f32[1,384], index: 2, kind: output, shape index: {}, may-alias: {1,2}]
  %s3 = sld [smem:[#allocation0]]
  $region18: #{_forward_impl.1} parent=0
    _
  %s5 = ssub.s32 1, %s3
  %s6 = scalar_select 0, %s5, %s3
  // Predicated region
  $region2: #{_forward_impl.1} parent=0 // pred_check
    _
  $region3: #{_forward_impl.1} parent=0 // pred_check_branch
    %8 = sbr.rel (0) target = $region5
  $region4: #{_forward_impl.1} parent=0 // pred_region
    _
  $region5: #{_forward_impl.1} parent=0 // pred_fallthru
    _
  // Predicated region
  $region6: #{_forward_impl.1} parent=0 // pred_check
    _
  $region7: #{_forward_impl.1} parent=0 // pred_check_branch
    %10 = sbr.rel (0) target = $region9
  $region8: #{_forward_impl.1} parent=0 // pred_region
    _
  $region9: #{_forward_impl.1} parent=0 // pred_fallthru
    _
  %v11 = vld [vmem:[%s0] sm:$0x3f]
  %v12 = vld [vmem:[%s0 + $0x6] sm:$0x3f]
  %v13 = vunpack.c.0.s8 %v11
  %v14 = vunpack.c.1.s8 %v11
  %v15 = vunpack.c.2.s8 %v11
  %v16 = vunpack.c.0.s8 %v12
  %v17 = vunpack.c.1.s8 %v12
  %v18 = vunpack.c.2.s8 %v12
  %v19 = vld [vmem:[%s1] sm:$0x7]
  %vm20 = vcmp.eq.s32.totalorder %v13, 0
  %vm21 = vcmp.eq.s32.totalorder %v14, 0
  %vm22 = vcmp.eq.s32.totalorder %v15, 0
  %vm23 = vcmp.eq.s32.totalorder %v16, 0
  %vm24 = vcmp.eq.s32.totalorder %v17, 0
  %vm25 = vcmp.eq.s32.totalorder %v18, 0
  %v26 = vsel %vm20, 1, 0
  %v27 = vsel %vm21, 1, 0
  %v28 = vsel %vm22, 1, 0
  %v29 = vsel %vm23, 1, 0
  %v30 = vsel %vm24, 1, 0
  %v31 = vsel %vm25, 1, 0
  %v32 = vcvt.s32.f32 %v26
  %v33 = vcvt.s32.f32 %v27
  %v34 = vcvt.s32.f32 %v28
  %v35 = vcvt.s32.f32 %v29
  %v36 = vcvt.s32.f32 %v30
  %v37 = vcvt.s32.f32 %v31
  %v38 = vadd.f32 %v32, %v35
  %v39 = vrot.slane %v38, 4
  %v40 = vadd.f32 %v38, %v39
  %v41 = vrot.slane %v40, 2
  %v42 = vadd.f32 %v40, %v41
  %v43 = vrot.slane %v42, 1
  %v44 = vadd.f32 %v42, %v43
  %v45 = vadd.f32 %v33, %v36
  %v46 = vrot.slane %v45, 4
  %v47 = vadd.f32 %v45, %v46
  %v48 = vrot.slane %v47, 2
  %v49 = vadd.f32 %v47, %v48
  %v50 = vrot.slane %v49, 1
  %v51 = vadd.f32 %v49, %v50
  %v52 = vadd.f32 %v34, %v37
  %v53 = vrot.slane %v52, 4
  %v54 = vadd.f32 %v52, %v53
  %v55 = vrot.slane %v54, 2
  %v56 = vadd.f32 %v54, %v55
  %v57 = vrot.slane %v56, 1
  %v58 = vadd.f32 %v56, %v57
  %v59 = vmul.f32 %v44, -0.5
  %v60 = vmul.f32 %v51, -0.5
  %v61 = vmul.f32 %v58, -0.5
  %v65 = vcombine.low %v59, %v60
  %v67 = vunpack.c.l.s4 1966171168
  %v68 = vunpack.c.0.s8 %v67
  %v69 = vlaneseq
  %v70 = vshrl.u32 %v69, 7
  %v71 = vsub.s32 %v68, %v70
  %v72 = vrot.slane %v65, %v71
  %v74 = vunpack.c.l.s4 1966171168
  %v75 = vunpack.c.0.s8 %v74
  %v76 = vlaneseq
  %v77 = vshrl.u32 %v76, 7
  %v78 = vsub.s32 %v75, %v77
  %v79 = vrot.slane %v61, %v78
  %v80 = vcombine.low %v72, %v79
  %v82 = vunpack.c.l.s4 1966171168
  %v83 = vunpack.c.0.s8 %v82
  %v84 = vlaneseq
  %v85 = vshrl.u32 %v84, 7
  %v86 = vsub.s32 %v83, %v85
  %v87 = vrot.slane %v80, %v86
  %v89 = vadd.f32 %v19, %v87
  %vm90 = vcmp.eq.s32.totalorder %v13, 1
  %vm91 = vcmp.eq.s32.totalorder %v14, 1
  %vm92 = vcmp.eq.s32.totalorder %v15, 1
  %vm93 = vcmp.eq.s32.totalorder %v16, 1
  %vm94 = vcmp.eq.s32.totalorder %v17, 1
  %vm95 = vcmp.eq.s32.totalorder %v18, 1
  %v96 = vsel %vm90, 1, 0
  %v97 = vsel %vm91, 1, 0
  %v98 = vsel %vm92, 1, 0
  %v99 = vsel %vm93, 1, 0
  %v100 = vsel %vm94, 1, 0
  %v101 = vsel %vm95, 1, 0
  %v102 = vcvt.s32.f32 %v96
  %v103 = vcvt.s32.f32 %v97
  %v104 = vcvt.s32.f32 %v98
  %v105 = vcvt.s32.f32 %v99
  %v106 = vcvt.s32.f32 %v100
  %v107 = vcvt.s32.f32 %v101
  %v108 = vadd.f32 %v102, %v105
  %v109 = vrot.slane %v108, 4
  %v110 = vadd.f32 %v108, %v109
  %v111 = vrot.slane %v110, 2
  %v112 = vadd.f32 %v110, %v111
  %v113 = vrot.slane %v112, 1
  %v114 = vadd.f32 %v112, %v113
  %v115 = vadd.f32 %v103, %v106
  %v116 = vrot.slane %v115, 4
  %v117 = vadd.f32 %v115, %v116
  %v118 = vrot.slane %v117, 2
  %v119 = vadd.f32 %v117, %v118
  %v120 = vrot.slane %v119, 1
  %v121 = vadd.f32 %v119, %v120
  %v122 = vadd.f32 %v104, %v107
  %v123 = vrot.slane %v122, 4
  %v124 = vadd.f32 %v122, %v123
  %v125 = vrot.slane %v124, 2
  %v126 = vadd.f32 %v124, %v125
  %v127 = vrot.slane %v126, 1
  %v128 = vadd.f32 %v126, %v127
  %v129 = vmul.f32 %v114, -37.8
  %v130 = vmul.f32 %v121, -37.8
  %v131 = vmul.f32 %v128, -37.8
  %v135 = vcombine.low %v129, %v130
  %v137 = vunpack.c.l.s4 1966171168
  %v138 = vunpack.c.0.s8 %v137
  %v139 = vlaneseq
  %v140 = vshrl.u32 %v139, 7
  %v141 = vsub.s32 %v138, %v140
  %v142 = vrot.slane %v135, %v141
  %v144 = vunpack.c.l.s4 1966171168
  %v145 = vunpack.c.0.s8 %v144
  %v146 = vlaneseq
  %v147 = vshrl.u32 %v146, 7
  %v148 = vsub.s32 %v145, %v147
  %v149 = vrot.slane %v131, %v148
  %v150 = vcombine.low %v142, %v149
  %v152 = vunpack.c.l.s4 1966171168
  %v153 = vunpack.c.0.s8 %v152
  %v154 = vlaneseq
  %v155 = vshrl.u32 %v154, 7
  %v156 = vsub.s32 %v153, %v155
  %v157 = vrot.slane %v150, %v156
  %v159 = vadd.f32 %v89, %v157
  %vm160 = vcmp.eq.s32.totalorder %v13, 2
  %vm161 = vcmp.eq.s32.totalorder %v14, 2
  %vm162 = vcmp.eq.s32.totalorder %v15, 2
  %vm163 = vcmp.eq.s32.totalorder %v16, 2
  %vm164 = vcmp.eq.s32.totalorder %v17, 2
  %vm165 = vcmp.eq.s32.totalorder %v18, 2
  %v166 = vsel %vm160, 1, 0
  %v167 = vsel %vm161, 1, 0
  %v168 = vsel %vm162, 1, 0
  %v169 = vsel %vm163, 1, 0
  %v170 = vsel %vm164, 1, 0
  %v171 = vsel %vm165, 1, 0
  %v172 = vcvt.s32.f32 %v166
  %v173 = vcvt.s32.f32 %v167
  %v174 = vcvt.s32.f32 %v168
  %v175 = vcvt.s32.f32 %v169
  %v176 = vcvt.s32.f32 %v170
  %v177 = vcvt.s32.f32 %v171
  %v178 = vadd.f32 %v172, %v175
  %v179 = vrot.slane %v178, 4
  %v180 = vadd.f32 %v178, %v179
  %v181 = vrot.slane %v180, 2
  %v182 = vadd.f32 %v180, %v181
  %v183 = vrot.slane %v182, 1
  %v184 = vadd.f32 %v182, %v183
  %v185 = vadd.f32 %v173, %v176
  %v186 = vrot.slane %v185, 4
  %v187 = vadd.f32 %v185, %v186
  %v188 = vrot.slane %v187, 2
  %v189 = vadd.f32 %v187, %v188
  %v190 = vrot.slane %v189, 1
  %v191 = vadd.f32 %v189, %v190
  %v192 = vadd.f32 %v174, %v177
  %v193 = vrot.slane %v192, 4
  %v194 = vadd.f32 %v192, %v193
  %v195 = vrot.slane %v194, 2
  %v196 = vadd.f32 %v194, %v195
  %v197 = vrot.slane %v196, 1
  %v198 = vadd.f32 %v196, %v197
  %v199 = vmul.f32 %v184, -54.5
  %v200 = vmul.f32 %v191, -54.5
  %v201 = vmul.f32 %v198, -54.5
  %v205 = vcombine.low %v199, %v200
  %v207 = vunpack.c.l.s4 1966171168
  %v208 = vunpack.c.0.s8 %v207
  %v209 = vlaneseq
  %v210 = vshrl.u32 %v209, 7
  %v211 = vsub.s32 %v208, %v210
  %v212 = vrot.slane %v205, %v211
  %v214 = vunpack.c.l.s4 1966171168
  %v215 = vunpack.c.0.s8 %v214
  %v216 = vlaneseq
  %v217 = vshrl.u32 %v216, 7
  %v218 = vsub.s32 %v215, %v217
  %v219 = vrot.slane %v201, %v218
  %v220 = vcombine.low %v212, %v219
  %v222 = vunpack.c.l.s4 1966171168
  %v223 = vunpack.c.0.s8 %v222
  %v224 = vlaneseq
  %v225 = vshrl.u32 %v224, 7
  %v226 = vsub.s32 %v223, %v225
  %v227 = vrot.slane %v220, %v226
  %v229 = vadd.f32 %v159, %v227
  %vm230 = vcmp.eq.s32.totalorder %v13, 3
  %vm231 = vcmp.eq.s32.totalorder %v14, 3
  %vm232 = vcmp.eq.s32.totalorder %v15, 3
  %vm233 = vcmp.eq.s32.totalorder %v16, 3
  %vm234 = vcmp.eq.s32.totalorder %v17, 3
  %vm235 = vcmp.eq.s32.totalorder %v18, 3
  %v236 = vsel %vm230, 1, 0
  %v237 = vsel %vm231, 1, 0
  %v238 = vsel %vm232, 1, 0
  %v239 = vsel %vm233, 1, 0
  %v240 = vsel %vm234, 1, 0
  %v241 = vsel %vm235, 1, 0
  %v242 = vcvt.s32.f32 %v236
  %v243 = vcvt.s32.f32 %v237
  %v244 = vcvt.s32.f32 %v238
  %v245 = vcvt.s32.f32 %v239
  %v246 = vcvt.s32.f32 %v240
  %v247 = vcvt.s32.f32 %v241
  %v248 = vadd.f32 %v242, %v245
  %v249 = vrot.slane %v248, 4
  %v250 = vadd.f32 %v248, %v249
  %v251 = vrot.slane %v250, 2
  %v252 = vadd.f32 %v250, %v251
  %v253 = vrot.slane %v252, 1
  %v254 = vadd.f32 %v252, %v253
  %v255 = vadd.f32 %v243, %v246
  %v256 = vrot.slane %v255, 4
  %v257 = vadd.f32 %v255, %v256
  %v258 = vrot.slane %v257, 2
  %v259 = vadd.f32 %v257, %v258
  %v260 = vrot.slane %v259, 1
  %v261 = vadd.f32 %v259, %v260
  %v262 = vadd.f32 %v244, %v247
  %v263 = vrot.slane %v262, 4
  %v264 = vadd.f32 %v262, %v263
  %v265 = vrot.slane %v264, 2
  %v266 = vadd.f32 %v264, %v265
  %v267 = vrot.slane %v266, 1
  %v268 = vadd.f32 %v266, %v267
  %v269 = vmul.f32 %v254, -75.0
  %v270 = vmul.f32 %v261, -75.0
  %v271 = vmul.f32 %v268, -75.0
  %v275 = vcombine.low %v269, %v270
  %v277 = vunpack.c.l.s4 1966171168
  %v278 = vunpack.c.0.s8 %v277
  %v279 = vlaneseq
  %v280 = vshrl.u32 %v279, 7
  %v281 = vsub.s32 %v278, %v280
  %v282 = vrot.slane %v275, %v281
  %v284 = vunpack.c.l.s4 1966171168
  %v285 = vunpack.c.0.s8 %v284
  %v286 = vlaneseq
  %v287 = vshrl.u32 %v286, 7
  %v288 = vsub.s32 %v285, %v287
  %v289 = vrot.slane %v271, %v288
  %v290 = vcombine.low %v282, %v289
  %v292 = vunpack.c.l.s4 1966171168
  %v293 = vunpack.c.0.s8 %v292
  %v294 = vlaneseq
  %v295 = vshrl.u32 %v294, 7
  %v296 = vsub.s32 %v293, %v295
  %v297 = vrot.slane %v290, %v296
  %v299 = vadd.f32 %v229, %v297
  %v300 = vlaneseq
  %vm301 = vcmp.ge.s32.totalorder %v300, 0
  %vm302 = vcmp.lt.s32.totalorder %v300, 384
  %vm303 = vmand %vm301, %vm302
  %304 = vst.msk [vmem:[%s2] sm:$0x7] %vm303, %v299
  // Predicated region
  $region10: #{_forward_impl.1} parent=0 // pred_check
    _
  $region11: #{_forward_impl.1} parent=0 // pred_check_branch
    %306 = sbr.rel (0) target = $region13
  $region12: #{_forward_impl.1} parent=0 // pred_region
    _
  $region13: #{_forward_impl.1} parent=0 // pred_fallthru
    _
  // Predicated region
  $region14: #{_forward_impl.1} parent=0 // pred_check
    _
  $region15: #{_forward_impl.1} parent=0 // pred_check_branch
    %308 = sbr.rel (0) target = $region17
  $region16: #{_forward_impl.1} parent=0 // pred_region
    _
  $region17: #{_forward_impl.1} parent=0 // pred_fallthru
    _

</llo_original>
